<compile_context>
chip_gen: v5e
topology: v5e:2x2
jax: 0.10.0
libtpu: 0.0.40
codegen_flags: <defaults>
</compile_context>

<pallas_src>
import jax
import jax.numpy as jnp
from jax.experimental import pallas as pl
from jax.experimental.pallas import tpu as pltpu

CIN = 3
COUT = 4


def linear_sigmoid_kernel(w_ref, b_ref, x_ref, o_ref):
    """w_ref: SMEM [COUT, CIN] f32; b_ref: SMEM [COUT] f32;
    x_ref: VMEM [CIN, TB] f32 (lane-dense batch); o_ref: VMEM [COUT, TB] f32."""
    # Lane-dense batch rows (static sublane slices -> zero-cost views).
    x0 = x_ref[0:1, :]
    x1 = x_ref[1:2, :]
    x2 = x_ref[2:3, :]

    # K=3 contraction as scalar(SMEM) * vector FMAs on the VPU; COUT=4 static unroll.
    for c in range(COUT):
        z = (w_ref[c, 0] * x0
             + w_ref[c, 1] * x1
             + w_ref[c, 2] * x2
             + b_ref[c])
        # Sigmoid via a single tanh EUP push (exact, not approx reciprocal).
        o_ref[c:c + 1, :] = (0.5 * jnp.tanh(0.5 * z) + 0.5).astype(o_ref.dtype)


def _cost_estimate(B):
    return pl.CostEstimate(
        flops=2 * B * CIN * COUT,
        transcendentals=B * COUT,
        bytes_accessed=4 * B * (CIN + COUT),
    )


def _forward_whole(xt, w, b):
    """Grid-free path: whole lane-dense arrays as single VMEM blocks, W/b in SMEM."""
    _, B = xt.shape
    return pl.pallas_call(
        linear_sigmoid_kernel,
        out_shape=jax.ShapeDtypeStruct((COUT, B), jnp.float32),
        in_specs=[
            pl.BlockSpec(memory_space=pltpu.MemorySpace.SMEM),   # w  [COUT, CIN]
            pl.BlockSpec(memory_space=pltpu.MemorySpace.SMEM),   # b  [COUT]
            pl.BlockSpec(memory_space=pltpu.MemorySpace.VMEM),   # x  [CIN, B]
        ],
        out_specs=pl.BlockSpec(memory_space=pltpu.MemorySpace.VMEM),
        cost_estimate=_cost_estimate(B),
    )(w, b, xt)


def _forward_batch_tiled(xt, w, b, tb):
    """Large-batch path: tile the lane axis (batch), W/b resident in SMEM,
    'parallel' batch axis so multi-TC chips (v7x) split it."""
    _, B = xt.shape
    tb = max(128, (tb // 128) * 128)   # keep the lane tile a multiple of 128
    return pl.pallas_call(
        linear_sigmoid_kernel,
        out_shape=jax.ShapeDtypeStruct((COUT, B), jnp.float32),
        grid_spec=pltpu.PrefetchScalarGridSpec(
            num_scalar_prefetch=0,
            grid=(pl.cdiv(B, tb),),
            in_specs=[
                pl.BlockSpec(memory_space=pltpu.MemorySpace.SMEM),   # w resident
                pl.BlockSpec(memory_space=pltpu.MemorySpace.SMEM),   # b resident
                pl.BlockSpec((CIN, tb), lambda i: (0, i)),           # lane-dense x tile
            ],
            out_specs=pl.BlockSpec((COUT, tb), lambda i: (0, i)),
        ),
        compiler_params=pltpu.CompilerParams(
            dimension_semantics=("parallel",),
        ),
        cost_estimate=_cost_estimate(B),
    )(w, b, xt)


def my_model_forward(x, w, b, *, batch_tile=64 * 1024):
    """x: [B, CIN] f32, w: [COUT, CIN] f32 (PyTorch layout), b: [COUT] f32 -> [B, COUT].

    batch_tile=64K keeps the double-buffered working set (~8 MiB) well inside
    v7x's 32 MiB scoped VMEM while amortizing per-grid-step overhead; the
    dispatch is footprint-based (no divisibility requirement)."""
    B = x.shape[0]
    assert x.shape[1] == CIN and w.shape == (COUT, CIN) and b.shape == (COUT,)
    xt = x.T                                    # [CIN, B] lane-dense (wrapper-side layout plumbing)
    if B <= batch_tile:
        yt = _forward_whole(xt, w, b)
    else:
        yt = _forward_batch_tiled(xt, w, b, batch_tile)
    return yt.T                                 # back to [B, COUT]


def init_params(key, in_features=CIN, out_features=COUT):
    # Deterministic init mimicking nn.Linear default: U(-1/sqrt(fan_in), 1/sqrt(fan_in)).
    kw, kb = jax.random.split(key)
    bound = 1.0 / jnp.sqrt(jnp.float32(in_features))
    w = jax.random.uniform(kw, (out_features, in_features), jnp.float32,
                           minval=-bound, maxval=bound)       # PyTorch [out, in] layout
    b = jax.random.uniform(kb, (out_features,), jnp.float32,
                           minval=-bound, maxval=bound)
    return w, b


if __name__ == "__main__":
    key = jax.random.PRNGKey(0)
    k_x, k_p, k_x2 = jax.random.split(key, 3)

    batch, in_features, out_features = 8, CIN, COUT
    x = jax.random.normal(k_x, (batch, in_features), jnp.float32)
    w, b = init_params(k_p, in_features, out_features)

    # Small batch: grid-free path.
    y = jax.block_until_ready(my_model_forward(x, w, b))
    y_ref = jax.nn.sigmoid(x @ w.T + b[None, :])
    assert y.shape == (batch, out_features)
    assert jnp.allclose(y, y_ref, atol=1e-5, rtol=1e-5), "mismatch vs reference (whole path)"

    # Also exercise the tiled path with a non-divisible batch (partial last block
    # writeback must be clipped correctly) while keeping shapes small.
    x2 = jax.random.normal(k_x2, (300, in_features), jnp.float32)
    y2 = jax.block_until_ready(my_model_forward(x2, w, b, batch_tile=128))
    y2_ref = jax.nn.sigmoid(x2 @ w.T + b[None, :])
    assert y2.shape == (300, out_features)
    assert jnp.allclose(y2, y2_ref, atol=1e-5, rtol=1e-5), "mismatch vs reference (tiled path)"

    print("KERNEL_OK")
</pallas_src>

<mosaic_0001>
module attributes {stable_mosaic.version = 11 : i64} {
  func.func @linear_sigmoid_kernel(%arg0: memref<4x3xf32, #tpu.memory_space<smem>>, %arg1: memref<4xf32, #tpu.memory_space<smem>>, %arg2: memref<3x8xf32, #tpu.memory_space<vmem>>, %arg3: memref<4x8xf32, #tpu.memory_space<vmem>>) attributes {dimension_semantics = [], scalar_prefetch = 0 : i64, scratch_operands = 0 : i64, tpu.core_type = #tpu.core_type<tc>} {
    %c0 = arith.constant 0 : index
    %c0_0 = arith.constant 0 : index
    %0 = vector.load %arg2[%c0, %c0_0] : memref<3x8xf32, #tpu.memory_space<vmem>>, vector<1x8xf32>
    %c1 = arith.constant 1 : index
    %c0_1 = arith.constant 0 : index
    %1 = vector.load %arg2[%c1, %c0_1] : memref<3x8xf32, #tpu.memory_space<vmem>>, vector<1x8xf32>
    %c2 = arith.constant 2 : index
    %c0_2 = arith.constant 0 : index
    %2 = vector.load %arg2[%c2, %c0_2] : memref<3x8xf32, #tpu.memory_space<vmem>>, vector<1x8xf32>
    %c0_3 = arith.constant 0 : index
    %c0_4 = arith.constant 0 : index
    %3 = memref.load %arg0[%c0_3, %c0_4] : memref<4x3xf32, #tpu.memory_space<smem>>
    %4 = vector.broadcast %3 : f32 to vector<1x8xf32>
    %5 = arith.mulf %4, %0 : vector<1x8xf32>
    %c0_5 = arith.constant 0 : index
    %c1_6 = arith.constant 1 : index
    %6 = memref.load %arg0[%c0_5, %c1_6] : memref<4x3xf32, #tpu.memory_space<smem>>
    %7 = vector.broadcast %6 : f32 to vector<1x8xf32>
    %8 = arith.mulf %7, %1 : vector<1x8xf32>
    %9 = arith.addf %5, %8 : vector<1x8xf32>
    %c0_7 = arith.constant 0 : index
    %c2_8 = arith.constant 2 : index
    %10 = memref.load %arg0[%c0_7, %c2_8] : memref<4x3xf32, #tpu.memory_space<smem>>
    %11 = vector.broadcast %10 : f32 to vector<1x8xf32>
    %12 = arith.mulf %11, %2 : vector<1x8xf32>
    %13 = arith.addf %9, %12 : vector<1x8xf32>
    %c0_9 = arith.constant 0 : index
    %14 = memref.load %arg1[%c0_9] : memref<4xf32, #tpu.memory_space<smem>>
    %15 = vector.broadcast %14 : f32 to vector<1x8xf32>
    %16 = arith.addf %13, %15 : vector<1x8xf32>
    %cst = arith.constant 5.000000e-01 : f32
    %17 = vector.broadcast %cst : f32 to vector<1x8xf32>
    %18 = arith.mulf %17, %16 : vector<1x8xf32>
    %19 = math.tanh %18 : vector<1x8xf32>
    %cst_10 = arith.constant 5.000000e-01 : f32
    %20 = vector.broadcast %cst_10 : f32 to vector<1x8xf32>
    %21 = arith.mulf %20, %19 : vector<1x8xf32>
    %cst_11 = arith.constant 5.000000e-01 : f32
    %22 = vector.broadcast %cst_11 : f32 to vector<1x8xf32>
    %23 = arith.addf %21, %22 : vector<1x8xf32>
    %c0_12 = arith.constant 0 : index
    %c0_13 = arith.constant 0 : index
    %24 = vector.load %arg3[%c0_12, %c0_13] : memref<4x8xf32, #tpu.memory_space<vmem>>, vector<1x8xf32>
    tpu.vector_store %arg3[%c0_12, %c0_13], %23 {strides = array<i32>} : memref<4x8xf32, #tpu.memory_space<vmem>>, vector<1x8xf32>,
    %c1_14 = arith.constant 1 : index
    %c0_15 = arith.constant 0 : index
    %25 = memref.load %arg0[%c1_14, %c0_15] : memref<4x3xf32, #tpu.memory_space<smem>>
    %26 = vector.broadcast %25 : f32 to vector<1x8xf32>
    %27 = arith.mulf %26, %0 : vector<1x8xf32>
    %c1_16 = arith.constant 1 : index
    %c1_17 = arith.constant 1 : index
    %28 = memref.load %arg0[%c1_16, %c1_17] : memref<4x3xf32, #tpu.memory_space<smem>>
    %29 = vector.broadcast %28 : f32 to vector<1x8xf32>
    %30 = arith.mulf %29, %1 : vector<1x8xf32>
    %31 = arith.addf %27, %30 : vector<1x8xf32>
    %c1_18 = arith.constant 1 : index
    %c2_19 = arith.constant 2 : index
    %32 = memref.load %arg0[%c1_18, %c2_19] : memref<4x3xf32, #tpu.memory_space<smem>>
    %33 = vector.broadcast %32 : f32 to vector<1x8xf32>
    %34 = arith.mulf %33, %2 : vector<1x8xf32>
    %35 = arith.addf %31, %34 : vector<1x8xf32>
    %c1_20 = arith.constant 1 : index
    %36 = memref.load %arg1[%c1_20] : memref<4xf32, #tpu.memory_space<smem>>
    %37 = vector.broadcast %36 : f32 to vector<1x8xf32>
    %38 = arith.addf %35, %37 : vector<1x8xf32>
    %cst_21 = arith.constant 5.000000e-01 : f32
    %39 = vector.broadcast %cst_21 : f32 to vector<1x8xf32>
    %40 = arith.mulf %39, %38 : vector<1x8xf32>
    %41 = math.tanh %40 : vector<1x8xf32>
    %cst_22 = arith.constant 5.000000e-01 : f32
    %42 = vector.broadcast %cst_22 : f32 to vector<1x8xf32>
    %43 = arith.mulf %42, %41 : vector<1x8xf32>
    %cst_23 = arith.constant 5.000000e-01 : f32
    %44 = vector.broadcast %cst_23 : f32 to vector<1x8xf32>
    %45 = arith.addf %43, %44 : vector<1x8xf32>
    %c1_24 = arith.constant 1 : index
    %c0_25 = arith.constant 0 : index
    %46 = vector.load %arg3[%c1_24, %c0_25] : memref<4x8xf32, #tpu.memory_space<vmem>>, vector<1x8xf32>
    tpu.vector_store %arg3[%c1_24, %c0_25], %45 {strides = array<i32>} : memref<4x8xf32, #tpu.memory_space<vmem>>, vector<1x8xf32>,
    %c2_26 = arith.constant 2 : index
    %c0_27 = arith.constant 0 : index
    %47 = memref.load %arg0[%c2_26, %c0_27] : memref<4x3xf32, #tpu.memory_space<smem>>
    %48 = vector.broadcast %47 : f32 to vector<1x8xf32>
    %49 = arith.mulf %48, %0 : vector<1x8xf32>
    %c2_28 = arith.constant 2 : index
    %c1_29 = arith.constant 1 : index
    %50 = memref.load %arg0[%c2_28, %c1_29] : memref<4x3xf32, #tpu.memory_space<smem>>
    %51 = vector.broadcast %50 : f32 to vector<1x8xf32>
    %52 = arith.mulf %51, %1 : vector<1x8xf32>
    %53 = arith.addf %49, %52 : vector<1x8xf32>
    %c2_30 = arith.constant 2 : index
    %c2_31 = arith.constant 2 : index
    %54 = memref.load %arg0[%c2_30, %c2_31] : memref<4x3xf32, #tpu.memory_space<smem>>
    %55 = vector.broadcast %54 : f32 to vector<1x8xf32>
    %56 = arith.mulf %55, %2 : vector<1x8xf32>
    %57 = arith.addf %53, %56 : vector<1x8xf32>
    %c2_32 = arith.constant 2 : index
    %58 = memref.load %arg1[%c2_32] : memref<4xf32, #tpu.memory_space<smem>>
    %59 = vector.broadcast %58 : f32 to vector<1x8xf32>
    %60 = arith.addf %57, %59 : vector<1x8xf32>
    %cst_33 = arith.constant 5.000000e-01 : f32
    %61 = vector.broadcast %cst_33 : f32 to vector<1x8xf32>
    %62 = arith.mulf %61, %60 : vector<1x8xf32>
    %63 = math.tanh %62 : vector<1x8xf32>
    %cst_34 = arith.constant 5.000000e-01 : f32
    %64 = vector.broadcast %cst_34 : f32 to vector<1x8xf32>
    %65 = arith.mulf %64, %63 : vector<1x8xf32>
    %cst_35 = arith.constant 5.000000e-01 : f32
    %66 = vector.broadcast %cst_35 : f32 to vector<1x8xf32>
    %67 = arith.addf %65, %66 : vector<1x8xf32>
    %c2_36 = arith.constant 2 : index
    %c0_37 = arith.constant 0 : index
    %68 = vector.load %arg3[%c2_36, %c0_37] : memref<4x8xf32, #tpu.memory_space<vmem>>, vector<1x8xf32>
    tpu.vector_store %arg3[%c2_36, %c0_37], %67 {strides = array<i32>} : memref<4x8xf32, #tpu.memory_space<vmem>>, vector<1x8xf32>,
    %c3 = arith.constant 3 : index
    %c0_38 = arith.constant 0 : index
    %69 = memref.load %arg0[%c3, %c0_38] : memref<4x3xf32, #tpu.memory_space<smem>>
    %70 = vector.broadcast %69 : f32 to vector<1x8xf32>
    %71 = arith.mulf %70, %0 : vector<1x8xf32>
    %c3_39 = arith.constant 3 : index
    %c1_40 = arith.constant 1 : index
    %72 = memref.load %arg0[%c3_39, %c1_40] : memref<4x3xf32, #tpu.memory_space<smem>>
    %73 = vector.broadcast %72 : f32 to vector<1x8xf32>
    %74 = arith.mulf %73, %1 : vector<1x8xf32>
    %75 = arith.addf %71, %74 : vector<1x8xf32>
    %c3_41 = arith.constant 3 : index
    %c2_42 = arith.constant 2 : index
    %76 = memref.load %arg0[%c3_41, %c2_42] : memref<4x3xf32, #tpu.memory_space<smem>>
    %77 = vector.broadcast %76 : f32 to vector<1x8xf32>
    %78 = arith.mulf %77, %2 : vector<1x8xf32>
    %79 = arith.addf %75, %78 : vector<1x8xf32>
    %c3_43 = arith.constant 3 : index
    %80 = memref.load %arg1[%c3_43] : memref<4xf32, #tpu.memory_space<smem>>
    %81 = vector.broadcast %80 : f32 to vector<1x8xf32>
    %82 = arith.addf %79, %81 : vector<1x8xf32>
    %cst_44 = arith.constant 5.000000e-01 : f32
    %83 = vector.broadcast %cst_44 : f32 to vector<1x8xf32>
    %84 = arith.mulf %83, %82 : vector<1x8xf32>
    %85 = math.tanh %84 : vector<1x8xf32>
    %cst_45 = arith.constant 5.000000e-01 : f32
    %86 = vector.broadcast %cst_45 : f32 to vector<1x8xf32>
    %87 = arith.mulf %86, %85 : vector<1x8xf32>
    %cst_46 = arith.constant 5.000000e-01 : f32
    %88 = vector.broadcast %cst_46 : f32 to vector<1x8xf32>
    %89 = arith.addf %87, %88 : vector<1x8xf32>
    %c3_47 = arith.constant 3 : index
    %c0_48 = arith.constant 0 : index
    %90 = vector.load %arg3[%c3_47, %c0_48] : memref<4x8xf32, #tpu.memory_space<vmem>>, vector<1x8xf32>
    tpu.vector_store %arg3[%c3_47, %c0_48], %89 {strides = array<i32>} : memref<4x8xf32, #tpu.memory_space<vmem>>, vector<1x8xf32>,
    return
  }
}

</mosaic_0001>

<llo_original>
// kernel: tpu_custom_call.1
$region0: #{tpu_custom_call.1}
  #allocation0 [shape = 'u32[]', space=smem, size = 0x4, offset = 0x4, fixed_abs, tag = 'smem constant byte address 0x4 - core index']
  #allocation1 [shape = 'u32[72,128]{1,0:T(1,128)}', space=vmem, size = 0x9000, scoped, tag = 'internal scratch']
  %s0 = inlined_call_operand.hbm [shape: f32[4,3], index: 0, kind: input, shape index: {}]
  %s1 = inlined_call_operand.hbm [shape: f32[4], index: 1, kind: input, shape index: {}]
  %s2 = inlined_call_operand.hbm [shape: f32[3,8], index: 2, kind: input, shape index: {}]
  %s3 = inlined_call_operand.hbm [shape: f32[4,8], index: 3, kind: output, shape index: {}]
  %s4 = sld [smem:[#allocation0]]
  $region34: #{tpu_custom_call.1} parent=0
    _
  %s6 = ssub.s32 1, %s4
  %s7 = scalar_select 0, %s6, %s4
  $region1: #{tpu_custom_call.1} parent=0
    #allocation2 [shape = 'u8[2048]{0}', space=smem, size = 0x800, scoped, tag = 'input window, operand 0, single buffered']
    #allocation3 [shape = 's32[1]{0}', space=sflag, size = 0x4, scoped, tag = 'scoped memory for tpu_custom_call.1']
    #allocation4 [shape = 's32[1]{0}', space=sflag, size = 0x4, scoped, tag = 'scoped memory for tpu_custom_call.1']
    #allocation5 [shape = 's32[1]{0}', space=sflag, size = 0x4, scoped, tag = 'scoped memory for tpu_custom_call.1']
    #allocation6 [shape = 'u8[512]{0}', space=smem, size = 0x200, scoped, tag = 'input window, operand 1, single buffered']
    #allocation7 [shape = 's32[1]{0}', space=sflag, size = 0x4, scoped, tag = 'scoped memory for tpu_custom_call.1']
    #allocation8 [shape = 'u8[2048]{0}', space=vmem, size = 0x800, scoped, tag = 'input window, operand 2, single buffered']
    #allocation9 [shape = 'u8[2048]{0}', space=vmem, size = 0x800, scoped, tag = 'output window, operand 0, single buffered']
    %8 = vsyncpa [#allocation5], 0
    %9 = vsyncpa [#allocation7], 0
    %10 = vsyncpa [#allocation3], 0
    %11 = vsyncpa [#allocation4], 0
    // Predicated region
    $region2: #{tpu_custom_call.1} parent=1 // pred_check
      _
    $region3: #{tpu_custom_call.1} parent=1 // pred_check_branch
      %13 = sbr.rel (0) target = $region5
    $region4: #{tpu_custom_call.1} parent=1 // pred_region
      %15 = vsyncadd [#allocation5], 0
      %s17 = sshll.u32 %s0, 4
      %s18 = int_to_ptr.hbm [resolvable:$true] %s17
      %20 = dma.hbm_to_smem %s18, 64, [#allocation2], [#allocation5]
    $region5: #{tpu_custom_call.1} parent=1 // pred_fallthru
      _
    // Predicated region
    $region6: #{tpu_custom_call.1} parent=1 // pred_check
      _
    $region7: #{tpu_custom_call.1} parent=1 // pred_check_branch
      %22 = sbr.rel (0) target = $region9
    $region8: #{tpu_custom_call.1} parent=1 // pred_region
      %24 = vsyncadd [#allocation7], 0
      %s26 = sshll.u32 %s1, 4
      %s27 = int_to_ptr.hbm [resolvable:$true] %s26
      %29 = dma.hbm_to_smem %s27, 16, [#allocation6], [#allocation7]
    $region9: #{tpu_custom_call.1} parent=1 // pred_fallthru
      _
    // Predicated region
    $region10: #{tpu_custom_call.1} parent=1 // pred_check
      _
    $region11: #{tpu_custom_call.1} parent=1 // pred_check_branch
      %31 = sbr.rel (0) target = $region13
    $region12: #{tpu_custom_call.1} parent=1 // pred_region
      %33 = vsyncadd [#allocation3], 0
      %s35 = sshll.u32 %s2, 4
      %s36 = int_to_ptr.hbm [resolvable:$true] %s35
      %s37 = sshll.u32 [#allocation8], 4
      %s38 = int_to_ptr.vmem [resolvable:$true] %s37
      %40 = dma.hbm_to_vmem [thread:$0]  %s36, 64, %s38, [#allocation3]
    $region13: #{tpu_custom_call.1} parent=1 // pred_fallthru
      _
    // Predicated region
    $region14: #{tpu_custom_call.1} parent=1 // pred_check
      _
    $region15: #{tpu_custom_call.1} parent=1 // pred_check_branch
      %42 = sbr.rel (0) target = $region17
    $region16: #{tpu_custom_call.1} parent=1 // pred_region
      %44 = dma.done [#allocation5], 64
    $region17: #{tpu_custom_call.1} parent=1 // pred_fallthru
      _
    // Predicated region
    $region18: #{tpu_custom_call.1} parent=1 // pred_check
      _
    $region19: #{tpu_custom_call.1} parent=1 // pred_check_branch
      %46 = sbr.rel (0) target = $region21
    $region20: #{tpu_custom_call.1} parent=1 // pred_region
      %48 = dma.done [#allocation7], 16
    $region21: #{tpu_custom_call.1} parent=1 // pred_fallthru
      _
    // Predicated region
    $region22: #{tpu_custom_call.1} parent=1 // pred_check
      _
    $region23: #{tpu_custom_call.1} parent=1 // pred_check_branch
      %50 = sbr.rel (0) target = $region25
    $region24: #{tpu_custom_call.1} parent=1 // pred_region
      %52 = dma.done [#allocation3], 64
    $region25: #{tpu_custom_call.1} parent=1 // pred_fallthru
      _
    %53 = sfence
    %v54 = vld [vmem:[#allocation8] sm:$0x1]
    %v55 = vld [vmem:[#allocation8 + $0x1] sm:$0x1]
    %v56 = vld [vmem:[#allocation8 + $0x2] sm:$0x1]
    %s57 = sld [smem:[#allocation2]]
    %v58 = vstv %s57
    %v59 = vmul.f32 %v58, %v54
    %s60 = sld [smem:[#allocation2 + $0x1]]
    %v61 = vstv %s60
    %v62 = vmul.f32 %v61, %v55
    %v63 = vadd.f32 %v59, %v62
    %s64 = sld [smem:[#allocation2 + $0x2]]
    %v65 = vstv %s64
    %v66 = vmul.f32 %v65, %v56
    %v67 = vadd.f32 %v63, %v66
    %s68 = sld [smem:[#allocation6]]
    %v69 = vstv %s68
    %v70 = vadd.f32 %v67, %v69
    %v71 = vmul.f32 %v70, 0.5
    %v72 = vtanh.pop %v71
    %v73 = vmul.f32 %v72, 0.5
    %v74 = vadd.f32 %v73, 0.5
    %vm75 = vcmask 57344
    %76 = vst.msk [vmem:[#allocation9] sm:$0x1] %vm75, %v74
    %s77 = sld [smem:[#allocation2 + $0x80]]
    %v78 = vstv %s77
    %v79 = vmul.f32 %v78, %v54
    %s80 = sld [smem:[#allocation2 + $0x81]]
    %v81 = vstv %s80
    %v82 = vmul.f32 %v81, %v55
    %v83 = vadd.f32 %v79, %v82
    %s84 = sld [smem:[#allocation2 + $0x82]]
    %v85 = vstv %s84
    %v86 = vmul.f32 %v85, %v56
    %v87 = vadd.f32 %v83, %v86
    %s88 = sld [smem:[#allocation6 + $0x1]]
    %v89 = vstv %s88
    %v90 = vadd.f32 %v87, %v89
    %v91 = vmul.f32 %v90, 0.5
    %v92 = vtanh.pop %v91
    %v93 = vmul.f32 %v92, 0.5
    %v94 = vadd.f32 %v93, 0.5
    %95 = vst.msk [vmem:[#allocation9 + $0x1] sm:$0x1] %vm75, %v94
    %s96 = sld [smem:[#allocation2 + $0x100]]
    %v97 = vstv %s96
    %v98 = vmul.f32 %v97, %v54
    %s99 = sld [smem:[#allocation2 + $0x101]]
    %v100 = vstv %s99
    %v101 = vmul.f32 %v100, %v55
    %v102 = vadd.f32 %v98, %v101
    %s103 = sld [smem:[#allocation2 + $0x102]]
    %v104 = vstv %s103
    %v105 = vmul.f32 %v104, %v56
    %v106 = vadd.f32 %v102, %v105
    %s107 = sld [smem:[#allocation6 + $0x2]]
    %v108 = vstv %s107
    %v109 = vadd.f32 %v106, %v108
    %v110 = vmul.f32 %v109, 0.5
    %v111 = vtanh.pop %v110
    %v112 = vmul.f32 %v111, 0.5
    %v113 = vadd.f32 %v112, 0.5
    %114 = vst.msk [vmem:[#allocation9 + $0x2] sm:$0x1] %vm75, %v113
    %s115 = sld [smem:[#allocation2 + $0x180]]
    %v116 = vstv %s115
    %v117 = vmul.f32 %v116, %v54
    %s118 = sld [smem:[#allocation2 + $0x181]]
    %v119 = vstv %s118
    %v120 = vmul.f32 %v119, %v55
    %v121 = vadd.f32 %v117, %v120
    %s122 = sld [smem:[#allocation2 + $0x182]]
    %v123 = vstv %s122
    %v124 = vmul.f32 %v123, %v56
    %v125 = vadd.f32 %v121, %v124
    %s126 = sld [smem:[#allocation6 + $0x3]]
    %v127 = vstv %s126
    %v128 = vadd.f32 %v125, %v127
    %v129 = vmul.f32 %v128, 0.5
    %v130 = vtanh.pop %v129
    %v131 = vmul.f32 %v130, 0.5
    %v132 = vadd.f32 %v131, 0.5
    %133 = vst.msk [vmem:[#allocation9 + $0x3] sm:$0x1] %vm75, %v132
    // Predicated region
    $region26: #{tpu_custom_call.1} parent=1 // pred_check
      _
    $region27: #{tpu_custom_call.1} parent=1 // pred_check_branch
      %135 = sbr.rel (0) target = $region29
    $region28: #{tpu_custom_call.1} parent=1 // pred_region
      %137 = vsyncadd [#allocation4], 0
      %s139 = sshll.u32 [#allocation9], 4
      %s140 = int_to_ptr.vmem [resolvable:$true] %s139
      %s141 = sshll.u32 %s3, 4
      %s142 = int_to_ptr.hbm [resolvable:$true] %s141
      %144 = dma.vmem_to_hbm [thread:$0]  %s140, 64, %s142, [#allocation4]
    $region29: #{tpu_custom_call.1} parent=1 // pred_fallthru
      _
    // Predicated region
    $region30: #{tpu_custom_call.1} parent=1 // pred_check
      _
    $region31: #{tpu_custom_call.1} parent=1 // pred_check_branch
      %146 = sbr.rel (0) target = $region33
    $region32: #{tpu_custom_call.1} parent=1 // pred_region
      %148 = dma.done [#allocation4], 64
    $region33: #{tpu_custom_call.1} parent=1 // pred_fallthru
      _
    %149 = vsyncpa [#allocation3], 1
    %150 = vsyncpa [#allocation4], 1
    %151 = vsyncpa [#allocation5], 1
    %152 = vsyncpa [#allocation7], 1

</llo_original>
